<compile_context>
chip_gen: v6e
topology: v6e:2x2x1
jax: 0.10.0
libtpu: 0.0.40
codegen_flags: <defaults>
</compile_context>

<pallas_src>
import math

import jax
import jax.numpy as jnp
from jax import lax
from jax.experimental import pallas as pl
from jax.experimental.pallas import tpu as pltpu

BN_EPS = 1e-5
VMEM_LIMIT = 48 * 1024 * 1024  # explicit scoped-VMEM limit (fits v7x's 64 MiB)


def _round_up(a, b):
    return ((a + b - 1) // b) * b


# ------------------------- Pallas kernels -------------------------

def _mid_fused_kernel(x_ref, w_ref, b_ref, attn_ref, b1_ref, o_ref):
    # x_ref: (C_in, TS) bf16, w_ref: (C_out, C_in) bf16, b_ref: (C_out, 1) f32,
    # attn_ref: (1, TS) f32, b1_ref: (C_out, 1) f32, o_ref: (C_out, TS) f32.
    y = jnp.dot(w_ref[...], x_ref[...], preferred_element_type=jnp.float32)
    mid = jnp.maximum(y + b_ref[...], 0.0)
    o_ref[...] = attn_ref[...] * mid + b1_ref[...]


def _make_branch1_kernel(inv_hw):
    # Global avg pool (tiled over spatial) + 1x1 conv (BN folded) + ReLU.
    # `inv_hw` is a plain Python float -> becomes a literal (no captured const).
    def kernel(x_ref, w_ref, b_ref, o_ref, acc_ref):
        # x_ref: (C_in, TS) bf16, w_ref: (C_out, C_in) f32,
        # b_ref/o_ref: (C_out, 1) f32, acc_ref: VMEM (C_in, 1) f32 running sums.
        s = pl.program_id(1)

        @pl.when(s == 0)
        def _():
            acc_ref[...] = jnp.zeros_like(acc_ref)

        acc_ref[...] += jnp.sum(x_ref[...].astype(jnp.float32),
                                axis=-1, keepdims=True)

        @pl.when(s == pl.num_programs(1) - 1)
        def _():
            xm = acc_ref[...] * inv_hw                                 # (C_in, 1)
            y = jnp.dot(w_ref[...], xm, preferred_element_type=jnp.float32)
            o_ref[...] = jnp.maximum(y + b_ref[...], 0.0)

    return kernel


def _make_conv1out_kernel(C_blk, K, H, W, unroll=4, max_py_unroll=8):
    # 'same' KxK conv -> 1 output channel, BN folded, ReLU.  Channel-blocked:
    # grid = (N, C/C_blk); the output block is the accumulator across blocks.
    KK = K * K
    pad = (K - 1) // 2
    Hp, Wp = H + 2 * pad, W + 2 * pad

    def channel_taps(xv, wbase, w_ref, acc0, acc1):
        # xv: (Hp, Wp) f32 single channel; two accumulators break the add chain.
        for i in range(K):
            row = xv[i:i + H, :]                     # hoist the sublane slice
            for j in range(K):
                wv = w_ref[wbase + i * K + j]
                t = wv * row[:, j:j + W]
                if (i * K + j) % 2 == 0:
                    acc0 = acc0 + t
                else:
                    acc1 = acc1 + t
        return acc0, acc1

    def kernel(x_ref, w_ref, b_ref, o_ref, xpad_ref):
        # x_ref: (C_blk, H, W) bf16 block; w_ref: (C*K*K,) SMEM f32;
        # b_ref: (1,) SMEM f32; o_ref: (H, W) f32 (resident accumulator);
        # xpad_ref: VMEM (C_blk, Hp, Wp) zero-padded staging scratch.
        cb = pl.program_id(1)

        @pl.when(cb == 0)
        def _():
            xpad_ref[...] = jnp.zeros_like(xpad_ref)   # borders stay zero after
            o_ref[...] = jnp.zeros_like(o_ref)

        # Stage the unpadded block into the padded scratch interior
        # (replaces the old jnp.pad HBM round trip).
        xpad_ref[:, pad:pad + H, pad:pad + W] = x_ref[...].astype(xpad_ref.dtype)

        zero = jnp.zeros((H, W), jnp.float32)
        wbase0 = cb * (C_blk * KK)

        if C_blk <= max_py_unroll:
            acc0, acc1 = zero, zero
            for c in range(C_blk):
                xv = xpad_ref[c].astype(jnp.float32)
                acc0, acc1 = channel_taps(xv, wbase0 + c * KK, w_ref, acc0, acc1)
        else:
            def body(c, accs):
                xv = xpad_ref[c].astype(jnp.float32)
                return channel_taps(xv, wbase0 + c * KK, w_ref, accs[0], accs[1])

            acc0, acc1 = lax.fori_loop(0, C_blk, body, (zero, zero),
                                       unroll=unroll)

        o_ref[...] += acc0 + acc1

        @pl.when(cb == pl.num_programs(1) - 1)
        def _():
            o_ref[...] = jnp.maximum(o_ref[...] + b_ref[0], 0.0)

    return kernel


# ------------------------- Pallas wrappers -------------------------

def mid_fused(x_flat, attn_flat, b1, w_oc_ic, b_o, tile_s):
    # x_flat: (N, C_in, HWp) bf16; attn_flat: (N, 1, HWp) f32; b1: (N, C_out, 1)
    # -> (N, C_out, HWp) f32 = relu(W @ x + b) * attn + b1
    N, C_in, HWp = x_flat.shape
    C_out = w_oc_ic.shape[0]
    n_sp = HWp // tile_s
    return pl.pallas_call(
        _mid_fused_kernel,
        out_shape=jax.ShapeDtypeStruct((N, C_out, HWp), jnp.float32),
        grid=(N, n_sp),
        in_specs=[
            pl.BlockSpec((None, C_in, tile_s), lambda n, s: (n, 0, s)),
            pl.BlockSpec((C_out, C_in), lambda n, s: (0, 0)),
            pl.BlockSpec((C_out, 1), lambda n, s: (0, 0)),
            pl.BlockSpec((None, 1, tile_s), lambda n, s: (n, 0, s)),
            pl.BlockSpec((None, C_out, 1), lambda n, s: (n, 0, 0)),
        ],
        out_specs=pl.BlockSpec((None, C_out, tile_s), lambda n, s: (n, 0, s)),
        compiler_params=pltpu.CompilerParams(
            dimension_semantics=("parallel", "parallel"),
            vmem_limit_bytes=VMEM_LIMIT),
    )(x_flat, w_oc_ic.astype(jnp.bfloat16), b_o.reshape(C_out, 1), attn_flat, b1)


def branch1_pool_conv(x_flat, hw_true, w_oc_ic, b_o, tile_s):
    # x_flat: (N, C_in, HWp) bf16 zero-padded -> (N, C_out, 1) per-(n, c) scalars.
    N, C_in, HWp = x_flat.shape
    C_out = w_oc_ic.shape[0]
    n_sp = HWp // tile_s
    kernel = _make_branch1_kernel(1.0 / float(hw_true))   # Python float literal
    return pl.pallas_call(
        kernel,
        out_shape=jax.ShapeDtypeStruct((N, C_out, 1), jnp.float32),
        grid=(N, n_sp),
        in_specs=[
            pl.BlockSpec((None, C_in, tile_s), lambda n, s: (n, 0, s)),
            pl.BlockSpec((C_out, C_in), lambda n, s: (0, 0)),
            pl.BlockSpec((C_out, 1), lambda n, s: (0, 0)),
        ],
        out_specs=pl.BlockSpec((None, C_out, 1), lambda n, s: (n, 0, 0)),
        scratch_shapes=[pltpu.VMEM((C_in, 1), jnp.float32)],
        compiler_params=pltpu.CompilerParams(
            dimension_semantics=("parallel", "arbitrary"),
            vmem_limit_bytes=VMEM_LIMIT),
    )(x_flat, w_oc_ic.astype(jnp.float32), b_o.reshape(C_out, 1))


def _pick_c_block(C, H, W, K, dtype_bytes=2, max_c_block=256):
    # Bound the per-step VMEM: double-buffered input block + padded scratch.
    Hp, Wp = H + K - 1, W + K - 1
    per_ch = (2 * H * W + Hp * Wp) * dtype_bytes
    budget = VMEM_LIMIT // 2
    cb = max(1, min(max_c_block, budget // max(per_ch, 1)))
    return min(cb, C)


def conv1out_bn_relu(x, w_ckk, b_scalar, compute_dtype=jnp.bfloat16):
    # x: (N, C, H, W) -> (N, H, W); same-padding KxK conv to 1 channel + BN + ReLU.
    N, C, H, W = x.shape
    K = w_ckk.shape[-1]
    pad = (K - 1) // 2
    Hp, Wp = H + 2 * pad, W + 2 * pad

    C_blk = _pick_c_block(C, H, W, K, dtype_bytes=jnp.dtype(compute_dtype).itemsize)
    if C % C_blk != 0:
        # TODO(synk): channel padding costs one extra pass over x; only hit
        # when C is large and not a multiple of the chosen block.
        C_pad = _round_up(C, C_blk)
        x = jnp.pad(x, ((0, 0), (0, C_pad - C), (0, 0), (0, 0)))
        w_ckk = jnp.pad(w_ckk, ((0, C_pad - C), (0, 0), (0, 0)))
        C = C_pad
    n_cblk = C // C_blk

    # TODO(synk): weights stay in flat SMEM; for very large C move them to a
    # VMEM (C_blk, K*K) block (SMEM pads to next power of two).
    kernel = _make_conv1out_kernel(C_blk, K, H, W)
    return pl.pallas_call(
        kernel,
        out_shape=jax.ShapeDtypeStruct((N, H, W), jnp.float32),
        grid=(N, n_cblk),
        in_specs=[
            pl.BlockSpec((None, C_blk, H, W), lambda n, c: (n, c, 0, 0)),
            pl.BlockSpec(memory_space=pltpu.MemorySpace.SMEM),
            pl.BlockSpec(memory_space=pltpu.MemorySpace.SMEM),
        ],
        out_specs=pl.BlockSpec((None, H, W), lambda n, c: (n, 0, 0)),
        scratch_shapes=[pltpu.VMEM((C_blk, Hp, Wp), compute_dtype)],
        compiler_params=pltpu.CompilerParams(
            dimension_semantics=("parallel", "arbitrary"),
            vmem_limit_bytes=VMEM_LIMIT),
    )(x.astype(compute_dtype),
      w_ckk.reshape(-1).astype(jnp.float32),
      b_scalar.reshape(1).astype(jnp.float32))


# ------------------------- JAX glue -------------------------

def maxpool2x2(x):
    # TODO(synk): assumes H, W divisible by 2 at every pyramid level; folding
    # this into conv1out_bn_relu would save one more HBM round trip.
    N, C, H, W = x.shape
    return x.reshape(N, C, H // 2, 2, W // 2, 2).max(axis=(3, 5))


def _resize_axis_ac(x, axis, out_size):
    in_size = x.shape[axis]
    if in_size == out_size:
        return x
    if out_size == 1:
        return jnp.take(x, jnp.array([0]), axis=axis)
    if in_size == 1:
        return jnp.repeat(x, out_size, axis=axis)
    pos = jnp.arange(out_size, dtype=jnp.float32) * ((in_size - 1) / (out_size - 1))
    i0 = jnp.clip(jnp.floor(pos).astype(jnp.int32), 0, in_size - 2)
    frac = pos - i0.astype(jnp.float32)
    x0 = jnp.take(x, i0, axis=axis)
    x1 = jnp.take(x, i0 + 1, axis=axis)
    bshape = [1] * x.ndim
    bshape[axis] = out_size
    frac = frac.reshape(bshape)
    return x0 * (1.0 - frac) + x1 * frac


# TODO(synk): bilinear align_corners=True resize is gather-based; kept in JAX glue.
def resize_bilinear_ac(x, out_h, out_w):
    x = _resize_axis_ac(x, -2, out_h)
    x = _resize_axis_ac(x, -1, out_w)
    return x


# ------------------------- parameters (BN folded, eval-mode) -------------------------

def fold_bn(w, b, gamma, beta, mean, var, eps=BN_EPS):
    scale = gamma / jnp.sqrt(var + eps)                       # (C_out,)
    w_f = w * scale.reshape((-1,) + (1,) * (w.ndim - 1))
    b_f = (b - mean) * scale + beta
    return w_f, b_f


def init_conv_bn_relu(key, c_in, c_out, k):
    ks = jax.random.split(key, 6)
    fan_in = c_in * k * k
    w = jax.random.normal(ks[0], (c_out, c_in, k, k), jnp.float32) / math.sqrt(fan_in)
    b = 0.1 * jax.random.normal(ks[1], (c_out,), jnp.float32)
    gamma = jax.random.uniform(ks[2], (c_out,), jnp.float32, minval=0.5, maxval=1.5)
    beta = 0.1 * jax.random.normal(ks[3], (c_out,), jnp.float32)
    mean = 0.1 * jax.random.normal(ks[4], (c_out,), jnp.float32)
    var = jax.random.uniform(ks[5], (c_out,), jnp.float32, minval=0.5, maxval=1.5)
    return fold_bn(w, b, gamma, beta, mean, var)


def init_fpa_params(key, in_channels, out_channels):
    keys = jax.random.split(key, 8)
    return {
        "branch1": init_conv_bn_relu(keys[0], in_channels, out_channels, 1),
        "mid":     init_conv_bn_relu(keys[1], in_channels, out_channels, 1),
        "down1":   init_conv_bn_relu(keys[2], in_channels, 1, 7),
        "down2":   init_conv_bn_relu(keys[3], 1, 1, 5),
        "down3a":  init_conv_bn_relu(keys[4], 1, 1, 3),
        "down3b":  init_conv_bn_relu(keys[5], 1, 1, 3),
        "conv2":   init_conv_bn_relu(keys[6], 1, 1, 5),
        "conv1":   init_conv_bn_relu(keys[7], 1, 1, 7),
    }


# ------------------------- tile sizing -------------------------

def _pick_spatial_tiles(C_in, C_out, HW, max_mid=2048, max_b1=8192):
    budget = int(VMEM_LIMIT * 0.6)
    # mid kernel per-lane bytes (double-buffered bf16 x + f32 out + f32 attn).
    per_lane_mid = 2 * (2 * C_in + 4 * C_out + 4)
    ts = max(128, min(max_mid, (budget // per_lane_mid) // 128 * 128))
    ts = min(ts, _round_up(HW, 128))
    HWp = _round_up(HW, ts)
    # branch1 only streams the bf16 x block + a tiny scratch -> larger tile.
    per_lane_b1 = 2 * 2 * C_in
    ts_b1 = max(128, min(max_b1, (budget // per_lane_b1) // 128 * 128))
    ts_b1 = min(ts_b1, HWp)
    k = max(1, ts_b1 // ts)
    while HWp % (k * ts) != 0:
        k -= 1
    return ts, k * ts, HWp


# ------------------------- FPABlock forward -------------------------

def fpa_block_forward(x, params):
    # x: (N, C_in, H, W) float32, NCHW (same as the PyTorch module).
    N, C_in, H, W = x.shape
    HW = H * W
    w_m, b_m = params["mid"]
    C_out = w_m.shape[0]

    ts, ts_b1, HWp = _pick_spatial_tiles(C_in, C_out, HW)

    # Single bf16 copy of x, shared by the mid and branch1 kernels.
    x_flat = x.reshape(N, C_in, HW).astype(jnp.bfloat16)
    if HWp != HW:
        x_flat = jnp.pad(x_flat, ((0, 0), (0, 0), (0, HWp - HW)))

    # branch1: global avg pool -> 1x1 ConvBnRelu (bilinear upsample from 1x1 is
    # a broadcast -> keep as per-(n, c) scalars, consumed by the fused mid kernel).
    w_b1, b_b1 = params["branch1"]
    b1 = branch1_pool_conv(x_flat, HW, w_b1[:, :, 0, 0], b_b1, ts_b1)   # (N, C_out, 1)

    # ---- attention pyramid (computed first so it can fuse into the mid pass) ----
    w_d1, b_d1 = params["down1"]
    x1 = conv1out_bn_relu(maxpool2x2(x), w_d1[0], b_d1)                 # (N, H/2, W/2)

    w_d2, b_d2 = params["down2"]
    x2 = conv1out_bn_relu(maxpool2x2(x1[:, None]), w_d2[0], b_d2)       # (N, H/4, W/4)

    w_d3a, b_d3a = params["down3a"]
    w_d3b, b_d3b = params["down3b"]
    x3 = conv1out_bn_relu(maxpool2x2(x2[:, None]), w_d3a[0], b_d3a)     # (N, H/8, W/8)
    x3 = conv1out_bn_relu(x3[:, None], w_d3b[0], b_d3b)                 # (N, H/8, W/8)
    x3 = resize_bilinear_ac(x3[:, None], H // 4, W // 4)[:, 0]          # (N, H/4, W/4)

    w_c2, b_c2 = params["conv2"]
    x2c = conv1out_bn_relu(x2[:, None], w_c2[0], b_c2)                  # (N, H/4, W/4)
    xm = resize_bilinear_ac((x2c + x3)[:, None], H // 2, W // 2)[:, 0]  # (N, H/2, W/2)

    w_c1, b_c1 = params["conv1"]
    x1c = conv1out_bn_relu(x1[:, None], w_c1[0], b_c1)                  # (N, H/2, W/2)
    attn = resize_bilinear_ac((xm + x1c)[:, None], H, W)[:, 0]          # (N, H, W)

    attn_flat = attn.reshape(N, 1, HW)
    if HWp != HW:
        attn_flat = jnp.pad(attn_flat, ((0, 0), (0, 0), (0, HWp - HW)))

    # mid (1x1 ConvBnRelu, bf16 MXU) fused with the final  out = attn * mid + b1.
    out = mid_fused(x_flat, attn_flat, b1, w_m[:, :, 0, 0], b_m, ts)    # (N, C_out, HWp)
    return out[:, :, :HW].reshape(N, C_out, H, W)


if __name__ == "__main__":
    key = jax.random.PRNGKey(0)
    k_x, k_p = jax.random.split(key)
    N, C_in, C_out, H, W = 2, 4, 8, 16, 16
    x = jax.random.normal(k_x, (N, C_in, H, W), jnp.float32)
    params = init_fpa_params(k_p, C_in, C_out)

    out = fpa_block_forward(x, params)
    out = jax.block_until_ready(out)
    assert out.shape == (N, C_out, H, W), out.shape
    assert bool(jnp.all(jnp.isfinite(out)))
    print("KERNEL_OK")
</pallas_src>

<mosaic_0001>
module attributes {stable_mosaic.version = 11 : i64} {
  func.func @kernel(%arg0: i32, %arg1: i32, %arg2: memref<1x4x256xbf16, #tpu.memory_space<vmem>>, %arg3: memref<8x4xf32, #tpu.memory_space<vmem>>, %arg4: memref<8x1xf32, #tpu.memory_space<vmem>>, %arg5: memref<1x8x1xf32, #tpu.memory_space<vmem>>, %arg6: memref<4x1xf32, #tpu.memory_space<vmem>>) attributes {dimension_semantics = [#tpu.dimension_semantics<parallel>, #tpu.dimension_semantics<arbitrary>], iteration_bounds = array<i64: 2, 1>, scalar_prefetch = 0 : i64, scratch_operands = 1 : i64, tpu.core_type = #tpu.core_type<tc>, window_params = [{transform_indices = @transform_0, window_bounds = array<i64: 1, 4, 256>}, {pipeline_mode = #tpu.pipeline_mode<synchronous>, transform_indices = @transform_1, window_bounds = array<i64: 8, 4>}, {pipeline_mode = #tpu.pipeline_mode<synchronous>, transform_indices = @transform_2, window_bounds = array<i64: 8, 1>}, {transform_indices = @transform_3, window_bounds = array<i64: 1, 8, 1>}]} {
    %c0_i32 = arith.constant 0 : i32
    %0 = arith.cmpi eq, %arg1, %c0_i32 : i32
    %1 = arith.extui %0 : i1 to i32
    %c0_i32_0 = arith.constant 0 : i32
    %2 = arith.cmpi ne, %1, %c0_i32_0 : i32
    scf.if %2 {
      %cst_9 = arith.constant 0.000000e+00 : f32
      %14 = vector.broadcast %cst_9 : f32 to vector<4x1xf32>
      %c0_10 = arith.constant 0 : index
      %c0_11 = arith.constant 0 : index
      %15 = vector.load %arg6[%c0_10, %c0_11] : memref<4x1xf32, #tpu.memory_space<vmem>>, vector<4x1xf32>
      tpu.vector_store %arg6[%c0_10, %c0_11], %14 {strides = array<i32>} : memref<4x1xf32, #tpu.memory_space<vmem>>, vector<4x1xf32>,
    } else {
    }
    %c0 = arith.constant 0 : index
    %c0_1 = arith.constant 0 : index
    %3 = vector.load %arg6[%c0, %c0_1] : memref<4x1xf32, #tpu.memory_space<vmem>>, vector<4x1xf32>
    %c0_2 = arith.constant 0 : index
    %c0_3 = arith.constant 0 : index
    %c0_4 = arith.constant 0 : index
    %4 = vector.load %arg2[%c0_2, %c0_3, %c0_4] : memref<1x4x256xbf16, #tpu.memory_space<vmem>>, vector<1x4x256xbf16>
    %5 = vector.shape_cast %4 : vector<1x4x256xbf16> to vector<4x256xbf16>
    %6 = arith.extf %5 : vector<4x256xbf16> to vector<4x256xf32>
    %cst = arith.constant dense<0.000000e+00> : vector<4xf32>
    %7 = vector.multi_reduction <add>, %6, %cst [1] : vector<4x256xf32> to vector<4xf32>
    %8 = vector.shape_cast %7 : vector<4xf32> to vector<4x1xf32>
    %9 = arith.addf %3, %8 : vector<4x1xf32>
    %c0_5 = arith.constant 0 : index
    %c0_6 = arith.constant 0 : index
    %10 = vector.load %arg6[%c0_5, %c0_6] : memref<4x1xf32, #tpu.memory_space<vmem>>, vector<4x1xf32>
    tpu.vector_store %arg6[%c0_5, %c0_6], %9 {strides = array<i32>} : memref<4x1xf32, #tpu.memory_space<vmem>>, vector<4x1xf32>,
    %c0_i32_7 = arith.constant 0 : i32
    %11 = arith.cmpi eq, %arg1, %c0_i32_7 : i32
    %12 = arith.extui %11 : i1 to i32
    %c0_i32_8 = arith.constant 0 : i32
    %13 = arith.cmpi ne, %12, %c0_i32_8 : i32
    scf.if %13 {
      %c0_9 = arith.constant 0 : index
      %c0_10 = arith.constant 0 : index
      %14 = vector.load %arg6[%c0_9, %c0_10] : memref<4x1xf32, #tpu.memory_space<vmem>>, vector<4x1xf32>
      %cst_11 = arith.constant 3.906250e-03 : f32
      %15 = vector.broadcast %cst_11 : f32 to vector<4x1xf32>
      %16 = arith.mulf %14, %15 : vector<4x1xf32>
      %c0_12 = arith.constant 0 : index
      %c0_13 = arith.constant 0 : index
      %17 = vector.load %arg3[%c0_12, %c0_13] : memref<8x4xf32, #tpu.memory_space<vmem>>, vector<8x4xf32>
      %cst_14 = arith.constant dense<0.000000e+00> : vector<8x1xf32>
      %18 = tpu.matmul %17, %16, %cst_14 {dimension_numbers = #tpu.dot_dimension_numbers<[1], [0], [0], [1], [0, 0, 1, 1], [], []>} : vector<8x4xf32>, vector<4x1xf32>, vector<8x1xf32> -> vector<8x1xf32>
      %c0_15 = arith.constant 0 : index
      %c0_16 = arith.constant 0 : index
      %19 = vector.load %arg4[%c0_15, %c0_16] : memref<8x1xf32, #tpu.memory_space<vmem>>, vector<8x1xf32>
      %20 = arith.addf %18, %19 : vector<8x1xf32>
      %cst_17 = arith.constant 0.000000e+00 : f32
      %21 = vector.broadcast %cst_17 : f32 to vector<8x1xf32>
      %22 = arith.maximumf %20, %21 : vector<8x1xf32>
      %c0_18 = arith.constant 0 : index
      %c0_19 = arith.constant 0 : index
      %c0_20 = arith.constant 0 : index
      %23 = vector.load %arg5[%c0_18, %c0_19, %c0_20] : memref<1x8x1xf32, #tpu.memory_space<vmem>>, vector<1x8x1xf32>
      %24 = vector.shape_cast %23 : vector<1x8x1xf32> to vector<8x1xf32>
      %25 = vector.shape_cast %22 : vector<8x1xf32> to vector<1x8x1xf32>
      tpu.vector_store %arg5[%c0_18, %c0_19, %c0_20], %25 {strides = array<i32>} : memref<1x8x1xf32, #tpu.memory_space<vmem>>, vector<1x8x1xf32>,
    } else {
    }
    return
  }
  func.func @transform_0(%arg0: i32, %arg1: i32) -> (i32, i32, i32) {
    %c0_i32 = arith.constant 0 : i32
    %c0_i32_0 = arith.constant 0 : i32
    return %arg0, %c0_i32, %arg1 : i32, i32, i32
  }
  func.func @transform_1(%arg0: i32, %arg1: i32) -> (i32, i32) {
    %c0_i32 = arith.constant 0 : i32
    %c0_i32_0 = arith.constant 0 : i32
    %c0_i32_1 = arith.constant 0 : i32
    return %c0_i32, %c0_i32_0 : i32, i32
  }
  func.func @transform_2(%arg0: i32, %arg1: i32) -> (i32, i32) {
    %c0_i32 = arith.constant 0 : i32
    %c0_i32_0 = arith.constant 0 : i32
    %c0_i32_1 = arith.constant 0 : i32
    return %c0_i32, %c0_i32_0 : i32, i32
  }
  func.func @transform_3(%arg0: i32, %arg1: i32) -> (i32, i32, i32) {
    %c0_i32 = arith.constant 0 : i32
    %c0_i32_0 = arith.constant 0 : i32
    %c0_i32_1 = arith.constant 0 : i32
    return %arg0, %c0_i32, %c0_i32_0 : i32, i32, i32
  }
}

</mosaic_0001>

<llo_original>
// kernel: tpu_custom_call.1
$region0: #{tpu_custom_call.1}
  #allocation0 [shape = 'u32[]', space=smem, size = 0x4, offset = 0x4, fixed_abs, tag = 'smem constant byte address 0x4 - core index']
  #allocation1 [shape = 'u32[144,128]{1,0:T(1,128)}', space=vmem, size = 0x12000, scoped, tag = 'internal scratch']
  #allocation2 [shape = 'f32[4,1]{1,0:T(4,128)}', space=vmem, size = 0x800, scoped, tag = 'scratch operand']
  %s0 = inlined_call_operand.vmem [shape: bf16[2,4,256], index: 0, kind: input, shape index: {}]
  %s1 = inlined_call_operand.vmem [shape: f32[8,4], index: 1, kind: input, shape index: {}]
  %s2 = inlined_call_operand.vmem [shape: f32[8,1], index: 2, kind: input, shape index: {}]
  %s3 = inlined_call_operand.vmem [shape: f32[2,8,1], index: 3, kind: output, shape index: {}]
  %s4 = sld [smem:[#allocation0]]
  $region53: #{tpu_custom_call.1} parent=0
    _
  %s6 = ssub.s32 1, %s4
  %s7 = scalar_select 0, %s6, %s4
  loop: start=0, step=1, limit=4
  $region2: #{tpu_custom_call.1} parent=0 // loop_pre_header
    _
  $region3: #{tpu_custom_call.1} parent=0 // loop_header
    %s9 = sphi 0, %s13
    %p10 = scmp.ge.s32.totalorder %s9, 4
    %s16 = sphi 0, %s28
    %s17 = sphi 0, %s24
    %s18 = sphi 0, %s16
    %s19 = sphi 0, %s17
    %s20 = sphi 0, %s18
    %s21 = sphi 0, %s19
    %s33 = sphi 0, %s35
    %s36 = sphi 0, %s33
    %s37 = sphi 0, %s36
    %s53 = sphi 0, %s37
    %s57 = sphi 0, %s57
    %s59 = sphi 0, %s57
    %s60 = sphi 0, %s59
    %s74 = sphi 0, %s60
    %s78 = sphi 0, %s78
    %s80 = sphi 0, %s78
    %s81 = sphi 0, %s80
    %s95 = sphi 0, %s81
    %s101 = sphi 0, %s103
    %s104 = sphi 0, %s101
    %s105 = sphi 0, %s104
    %s121 = sphi 0, %s105
  $region4: #{tpu_custom_call.1} parent=0 // loop_header_branch
    %12 = sbr.rel (%p10) target = $region8
  $region5: #{tpu_custom_call.1} parent=0 // loop_body
    %s14 = ssub.s32 %s9, 1
    %s15 = ssub.s32 %s9, 2
    %s22 = sadd.s32 1, %s17
    %p23 = scmp.ge.s32.totalorder %s22, 1
    %s24 = scalar_select %p23, 0, %s22
    %s25 = sadd.s32 1, %s16
    %s26 = scalar_select %p23, %s25, %s16
    %p27 = scmp.ge.s32.totalorder %s26, 2
    %s28 = scalar_select %p27, 0, %s26
    %s29 = ssub.s32 %s16, %s28
    %s30 = ssub.s32 %s17, %s24
    %s31 = sor.u32 %s29, %s30
    %p32 = scmp.eq.s32.totalorder %s31, 0
    %s34 = sadd.s32 %s33, 1
    %s35 = scalar_select %p32, %s33, %s34
    %p38 = pneg %p32
    %p39 = scmp.eq.s32.totalorder %s9, 1
    %p40 = por %p38, %p39
    %p41 = scmp.ne.s32.totalorder %s33, %s36
    %p42 = scmp.eq.s32.totalorder %s9, 0
    %p43 = por %p41, %p42
    %p44 = scmp.ne.s32.totalorder %s33, %s36
    %p45 = scmp.eq.s32.totalorder %s14, 1
    %p46 = por %p44, %p45
    %p47 = scmp.ne.s32.totalorder %s36, %s37
    %p48 = scmp.eq.s32.totalorder %s14, 0
    %p49 = por %p47, %p48
    %p50 = scmp.ne.s32.totalorder %s36, %s37
    %p51 = scmp.eq.s32.totalorder %s15, 1
    %p52 = por %p50, %p51
    %p54 = scmp.ne.s32.totalorder %s37, %s53
    %p55 = scmp.eq.s32.totalorder %s15, 0
    %p56 = por %p54, %p55
    %s58 = sadd.s32 %s57, 1
    %p61 = scmp.eq.s32.totalorder %s9, 1
    %p62 = scmp.ne.s32.totalorder %s57, %s59
    %p63 = scmp.eq.s32.totalorder %s9, 0
    %p64 = por %p62, %p63
    %p65 = scmp.ne.s32.totalorder %s57, %s59
    %p66 = scmp.eq.s32.totalorder %s14, 1
    %p67 = por %p65, %p66
    %p68 = scmp.ne.s32.totalorder %s59, %s60
    %p69 = scmp.eq.s32.totalorder %s14, 0
    %p70 = por %p68, %p69
    %p71 = scmp.ne.s32.totalorder %s59, %s60
    %p72 = scmp.eq.s32.totalorder %s15, 1
    %p73 = por %p71, %p72
    %p75 = scmp.ne.s32.totalorder %s60, %s74
    %p76 = scmp.eq.s32.totalorder %s15, 0
    %p77 = por %p75, %p76
    %s79 = sadd.s32 %s78, 1
    %p82 = scmp.eq.s32.totalorder %s9, 1
    %p83 = scmp.ne.s32.totalorder %s78, %s80
    %p84 = scmp.eq.s32.totalorder %s9, 0
    %p85 = por %p83, %p84
    %p86 = scmp.ne.s32.totalorder %s78, %s80
    %p87 = scmp.eq.s32.totalorder %s14, 1
    %p88 = por %p86, %p87
    %p89 = scmp.ne.s32.totalorder %s80, %s81
    %p90 = scmp.eq.s32.totalorder %s14, 0
    %p91 = por %p89, %p90
    %p92 = scmp.ne.s32.totalorder %s80, %s81
    %p93 = scmp.eq.s32.totalorder %s15, 1
    %p94 = por %p92, %p93
    %p96 = scmp.ne.s32.totalorder %s81, %s95
    %p97 = scmp.eq.s32.totalorder %s15, 0
    %p98 = por %p96, %p97
    %s99 = ssub.s32 %s16, %s28
    %p100 = scmp.eq.s32.totalorder %s99, 0
    %s102 = sadd.s32 %s101, 1
    %s103 = scalar_select %p100, %s101, %s102
    %p106 = pneg %p100
    %p107 = scmp.eq.s32.totalorder %s9, 1
    %p108 = por %p106, %p107
    %p109 = scmp.ne.s32.totalorder %s101, %s104
    %p110 = scmp.eq.s32.totalorder %s9, 0
    %p111 = por %p109, %p110
    %p112 = scmp.ne.s32.totalorder %s101, %s104
    %p113 = scmp.eq.s32.totalorder %s14, 1
    %p114 = por %p112, %p113
    %p115 = scmp.ne.s32.totalorder %s104, %s105
    %p116 = scmp.eq.s32.totalorder %s14, 0
    %p117 = por %p115, %p116
    %p118 = scmp.ne.s32.totalorder %s104, %s105
    %p119 = scmp.eq.s32.totalorder %s15, 1
    %p120 = por %p118, %p119
    %p122 = scmp.ne.s32.totalorder %s105, %s121
    %p123 = scmp.eq.s32.totalorder %s15, 0
    %p124 = por %p122, %p123
    %p125 = scmp.le.s32.totalorder 1, %s9
    %p126 = scmp.lt.s32.totalorder %s9, 3
    %p127 = pnand %p125, %p126
    %p128 = pneg %p127
    // Predicated region
    $region9: #{tpu_custom_call.1} parent=5 // pred_check
      _
    $region10: #{tpu_custom_call.1} parent=5 // pred_check_branch
      %130 = sbr.rel (%p127) target = $region12
    $region11: #{tpu_custom_call.1} parent=5 // pred_region
      %s131 = ssub.s32 %s9, 1
      // Predicated region
      $region13: #{tpu_custom_call.1} parent=11 // pred_check
        %p132 = pneg %p70
      $region14: #{tpu_custom_call.1} parent=11 // pred_check_branch
        %134 = sbr.rel (%p132) target = $region16
      $region15: #{tpu_custom_call.1} parent=11 // pred_region
        _
      $region16: #{tpu_custom_call.1} parent=11 // pred_fallthru
        _
      // Predicated region
      $region17: #{tpu_custom_call.1} parent=11 // pred_check
        %p135 = pneg %p91
      $region18: #{tpu_custom_call.1} parent=11 // pred_check_branch
        %137 = sbr.rel (%p135) target = $region20
      $region19: #{tpu_custom_call.1} parent=11 // pred_region
        _
      $region20: #{tpu_custom_call.1} parent=11 // pred_fallthru
        _
    $region12: #{tpu_custom_call.1} parent=5 // pred_fallthru
      _
    %p138 = scmp.lt.s32.totalorder %s9, 2
    // Predicated region
    $region21: #{tpu_custom_call.1} parent=5 // pred_check
      %p139 = pneg %p138
    $region22: #{tpu_custom_call.1} parent=5 // pred_check_branch
      %141 = sbr.rel (%p139) target = $region24
    $region23: #{tpu_custom_call.1} parent=5 // pred_region
      // Predicated region
      $region25: #{tpu_custom_call.1} parent=23 // pred_check
        %p142 = pneg %p43
      $region26: #{tpu_custom_call.1} parent=23 // pred_check_branch
        %144 = sbr.rel (%p142) target = $region28
      $region27: #{tpu_custom_call.1} parent=23 // pred_region
        %s145 = smul.u32 2, %s17
        %p146 = scmp.lt.s32.totalorder %s16, 1
        %s147 = scalar_select %p146, %s16, 1
        %p148 = scmp.lt.s32.totalorder %s145, 1
        %s149 = scalar_select %p148, %s145, 1
        %s150 = smul.addr %s147, 2
        %s151 = sadd.s32 %s149, %s150
        %s152 = smul.addr %s151, 2
        %s153 = scalar_lea.vmem %s0, %s152
        %s154 = smul.u32 2, %s17
      $region28: #{tpu_custom_call.1} parent=23 // pred_fallthru
        _
    $region24: #{tpu_custom_call.1} parent=5 // pred_fallthru
      _
    %p155 = scmp.le.s32.totalorder 1, %s9
    %p156 = scmp.lt.s32.totalorder %s9, 3
    %p157 = pnand %p155, %p156
    %p158 = pneg %p157
    // Predicated region
    $region29: #{tpu_custom_call.1} parent=5 // pred_check
      _
    $region30: #{tpu_custom_call.1} parent=5 // pred_check_branch
      %160 = sbr.rel (%p157) target = $region32
    $region31: #{tpu_custom_call.1} parent=5 // pred_region
      %s161 = ssub.s32 %s9, 1
      %s162 = smul.u32 2, %s19
      %p163 = scmp.lt.s32.totalorder %s18, 1
      %s164 = scalar_select %p163, %s18, 1
      %p165 = scmp.lt.s32.totalorder %s162, 1
      %s166 = scalar_select %p165, %s162, 1
      %s167 = smul.addr %s164, 2
      %s168 = sadd.s32 %s166, %s167
      %s169 = smul.addr %s168, 2
      %s170 = scalar_lea.vmem %s0, %s169
      %p171 = pneg %p49
      %p172 = pneg %p46
      %p173 = pneg %p70
      %p174 = pneg %p67
      %p175 = pneg %p91
      %p176 = pneg %p88
      %p177 = pneg %p117
      %p178 = pneg %p114
      %p179 = scmp.lt.s32.totalorder %s18, 1
      %s180 = scalar_select %p179, %s18, 1
      %s181 = smul.addr %s180, 8
      %s182 = scalar_lea.vmem %s3, %s181
      %s183 = smul.u32 2, %s19
      %p184 = scmp.lt.s32.totalorder %s18, 1
      %s185 = scalar_select %p184, %s18, 1
      %p186 = scmp.lt.s32.totalorder %s183, 1
      %s187 = scalar_select %p186, %s183, 1
      %s188 = smul.addr %s185, 2
      %s189 = sadd.s32 %s187, %s188
      %s190 = smul.addr %s189, 2
      %s191 = scalar_lea.vmem %s0, %s190
      %s192 = smul.u32 2, %s19
      %p193 = scmp.lt.s32.totalorder %s18, 1
      %s194 = scalar_select %p193, %s18, 1
      %s195 = smul.addr %s194, 8
      %s196 = scalar_lea.vmem %s3, %s195
      %p197 = scmp.eq.s32.totalorder %s19, 0
      // Predicated region
      $region33: #{tpu_custom_call.1} parent=31 // pred_check
        %p198 = pneg %p197
      $region34: #{tpu_custom_call.1} parent=31 // pred_check_branch
        %200 = sbr.rel (%p198) target = $region36
      $region35: #{tpu_custom_call.1} parent=31 // pred_region
        %vm201 = vcmask 3072
        %202 = vst.msk [vmem:[#allocation2] sm:$0xf] %vm201, 0.0
      $region36: #{tpu_custom_call.1} parent=31 // pred_fallthru
        _
      %v203 = vld [vmem:[#allocation2] sm:$0xf]
      %v204 = vld [vmem:[%s191] sm:$0xf]
      %v205 = vunpack.c.l.bf16 %v204
      %v207 = vcombine.high %v205, %v205
      %vm209 = vcmask 1043456
      %v210 = vsel %vm209, %v205, 0.0
      %v211 = vsel %vm209, %v207, 0.0
      %v212 = vadd.f32 %v210, %v211
      %213 = vadd.xlane.f32.xlu0 %v212
      %v214 = vpop.xlane.xlu0 %213
      %v215 = vadd.f32 %v203, %v214
      %vm216 = vcmask 3072
      %217 = vst.msk [vmem:[#allocation2] sm:$0xf] %vm216, %v215
      // Predicated region
      $region37: #{tpu_custom_call.1} parent=31 // pred_check
        %p218 = pneg %p197
      $region38: #{tpu_custom_call.1} parent=31 // pred_check_branch
        %220 = sbr.rel (%p218) target = $region40
      $region39: #{tpu_custom_call.1} parent=31 // pred_region
        %v221 = vld [vmem:[#allocation2] sm:$0xf]
        %v222 = vmul.f32 %v221, 0.00390625
        %v223 = vld [vmem:[%s1] sm:$0xff]
        %v224 = vld [vmem:[%s2] sm:$0xff]
        %vm225 = vcmask 31744
        %v227 = vsel %vm225, %v223, 0
        %v230 = vsel %vm209, %v222, 0
        %232 = vmatprep.subr.mxu0 0.0
        %233 = vmatpush1.msra.mxu0 0.0
        %234 = vmatprep.subr.mxu0 0.0
        %235 = vmatpush1.msra.mxu0 0.0
        %236 = vmatprep.subr.mxu0 0.0
        %237 = vmatpush1.msra.mxu0 0.0
        %238 = vmatprep.subr.mxu0 0.0
        %239 = vmatpush1.msra.mxu0 0.0
        %240 = vmatprep.subr.mxu0 0.0
        %241 = vmatpush1.msra.mxu0 0.0
        %242 = vmatprep.subr.mxu0 0.0
        %243 = vmatpush1.msra.mxu0 0.0
        %244 = vmatprep.subr.mxu0 0.0
        %245 = vmatpush1.msra.mxu0 0.0
        %246 = vmatprep.subr.mxu0 0.0
        %247 = vmatpush1.msra.mxu0 0.0
        %248 = vmatprep.subr.mxu0 0.0
        %249 = vmatpush1.msra.mxu0 0.0
        %250 = vmatprep.subr.mxu0 0.0
        %251 = vmatpush1.msra.mxu0 0.0
        %252 = vmatprep.subr.mxu0 0.0
        %253 = vmatpush1.msra.mxu0 0.0
        %254 = vmatprep.subr.mxu0 0.0
        %255 = vmatpush1.msra.mxu0 0.0
        %256 = vmatprep.subr.mxu0 0.0
        %257 = vmatpush1.msra.mxu0 0.0
        %258 = vmatprep.subr.mxu0 0.0
        %259 = vmatpush1.msra.mxu0 0.0
        %260 = vmatprep.subr.mxu0 0.0
        %261 = vmatpush1.msra.mxu0 0.0
        %262 = vmatprep.subr.mxu0 0.0
        %263 = vmatpush1.msra.mxu0 %v230
        %264 = vmatprep.subr.mxu0 0.0
        %265 = vmatpush2.msra.mxu0 0.0
        %266 = vmatprep.subr.mxu0 0.0
        %267 = vmatpush2.msra.mxu0 0.0
        %268 = vmatprep.subr.mxu0 0.0
        %269 = vmatpush2.msra.mxu0 0.0
        %270 = vmatprep.subr.mxu0 0.0
        %271 = vmatpush2.msra.mxu0 0.0
        %272 = vmatprep.subr.mxu0 0.0
        %273 = vmatpush2.msra.mxu0 0.0
        %274 = vmatprep.subr.mxu0 0.0
        %275 = vmatpush2.msra.mxu0 0.0
        %276 = vmatprep.subr.mxu0 0.0
        %277 = vmatpush2.msra.mxu0 0.0
        %278 = vmatprep.subr.mxu0 0.0
        %279 = vmatpush2.msra.mxu0 0.0
        %280 = vmatprep.subr.mxu0 0.0
        %281 = vmatpush2.msra.mxu0 0.0
        %282 = vmatprep.subr.mxu0 0.0
        %283 = vmatpush2.msra.mxu0 0.0
        %284 = vmatprep.subr.mxu0 0.0
        %285 = vmatpush2.msra.mxu0 0.0
        %286 = vmatprep.subr.mxu0 0.0
        %287 = vmatpush2.msra.mxu0 0.0
        %288 = vmatprep.subr.mxu0 0.0
        %289 = vmatpush2.msra.mxu0 0.0
        %290 = vmatprep.subr.mxu0 0.0
        %291 = vmatpush2.msra.mxu0 0.0
        %292 = vmatprep.subr.mxu0 0.0
        %293 = vmatpush2.msra.mxu0 0.0
        %294 = vmatprep.subr.mxu0 0.0
        %295 = vmatpush2.msra.mxu0 0.0
        %296 = vmatprep.mubr.f32.mxu0 0.0
        %297 = vmatmul.mubr.f32.gmra.mxu0 %v227
        %v298 = vpop.f32.mrf.mxu0
        %v299 = vadd.f32 %v224, %v298
        %v300 = vpop.f32.mrf.mxu0
        %301 = vdwg.mxu0
        %v302 = vmax.f32 %v299, 0.0
        %vm303 = vcmask 7168
        %304 = vst.msk [vmem:[%s196] sm:$0xff] %vm303, %v302
      $region40: #{tpu_custom_call.1} parent=31 // pred_fallthru
        _
      %p305 = scmp.lt.s32.totalorder %s18, 1
      %s306 = scalar_select %p305, %s18, 1
      %s307 = smul.addr %s306, 8
      %s308 = scalar_lea.vmem %s3, %s307
      // Predicated region
      $region41: #{tpu_custom_call.1} parent=31 // pred_check
        %p309 = pneg %p114
      $region42: #{tpu_custom_call.1} parent=31 // pred_check_branch
        %311 = sbr.rel (%p309) target = $region44
      $region43: #{tpu_custom_call.1} parent=31 // pred_region
        _
      $region44: #{tpu_custom_call.1} parent=31 // pred_fallthru
        _
    $region32: #{tpu_custom_call.1} parent=5 // pred_fallthru
      _
    %p312 = scmp.le.s32.totalorder 2, %s9
    // Predicated region
    $region45: #{tpu_custom_call.1} parent=5 // pred_check
      %p313 = pneg %p312
    $region46: #{tpu_custom_call.1} parent=5 // pred_check_branch
      %315 = sbr.rel (%p313) target = $region48
    $region47: #{tpu_custom_call.1} parent=5 // pred_region
      %s316 = ssub.s32 %s9, 2
      // Predicated region
      $region49: #{tpu_custom_call.1} parent=47 // pred_check
        %p317 = pneg %p120
      $region50: #{tpu_custom_call.1} parent=47 // pred_check_branch
        %319 = sbr.rel (%p317) target = $region52
      $region51: #{tpu_custom_call.1} parent=47 // pred_region
        %p320 = scmp.lt.s32.totalorder %s20, 1
        %s321 = scalar_select %p320, %s20, 1
        %s322 = smul.addr %s321, 8
        %s323 = scalar_lea.vmem %s3, %s322
      $region52: #{tpu_custom_call.1} parent=47 // pred_fallthru
        _
    $region48: #{tpu_custom_call.1} parent=5 // pred_fallthru
      _
  $region6: #{tpu_custom_call.1} parent=0 // loop_footer
    %s13 = sadd.s32 1, %s9
  $region7: #{tpu_custom_call.1} parent=0 // loop_footer_branch
    %8 = sbr.rel target = $region3
  $region8: #{tpu_custom_call.1} parent=0 // loop_exit
    _

</llo_original>
